<compile_context>
chip_gen: v6e
topology: v6e:2x2x1
jax: 0.10.0
libtpu: 0.0.40
codegen_flags: <defaults>
</compile_context>

<pallas_src>
import functools

import jax
import jax.numpy as jnp
from jax import lax
from jax.experimental import pallas as pl
from jax.experimental.pallas import tpu as pltpu


def _round_up(x, m):
    return (x + m - 1) // m * m


def _vmem_capacity_bytes():
    """Physical VMEM per TensorCore (v5e/v6e: 128 MiB, v7x: 64 MiB)."""
    try:
        return int(pltpu.get_tpu_info().vmem_capacity_bytes)
    except Exception:
        return 64 * 1024 * 1024  # conservative fallback (v7x per-core figure)


# ----------------------------- Pallas kernel -------------------------------


def _downsample_conv_kernel(x_ref, wa_ref, wb_ref, b_ref, o_ref, *, m, cp):
    """One (batch, row-tile) step of the 3x3 / stride-2 conv.

    x_ref  : (m, 6*cp) bf16  -- merged (out_row, col-pair) rows; lane blocks
                                [E0 E1 E2 O0 O1 O2]: Ek = padded column 2q of
                                padded row 2r+k, Ok = padded column 2q+1.
    wa_ref : (6*cp, cp) bf16 -- kw=0 weights for the E blocks, kw=1 for the O
                                blocks (row block k -> tap (kh=k, kw)).
    wb_ref : (3*cp, cp) bf16 -- kw=2 weights for the E blocks.
    b_ref  : (1, cp)    f32
    o_ref  : (m, cp)         -- merged (out_row, col-pair) output; the q == Wo
                                overflow rows are garbage, sliced off outside.
    """
    x = x_ref[...]
    # kw = 0 and kw = 1 taps of all three kh rows: one deep K = 6*cp matmul.
    acc = jnp.dot(x, wa_ref[...], preferred_element_type=jnp.float32)
    # kw = 2 taps read the E blocks of the NEXT merged row.  Do the unshifted
    # K = 3*cp matmul (x[:, :3*cp] is a whole-vreg lane slice -> free) and shift
    # the f32 partial up by one sublane with an XLU roll.  The wrapped row
    # (j = m-1) only lands in the discarded q == Wo overflow row of the tile
    # because m = t_ho * wq, so the tile's last merged row always has q == Wo.
    p2 = jnp.dot(x[:, : 3 * cp], wb_ref[...], preferred_element_type=jnp.float32)
    p2 = pltpu.roll(p2, shift=m - 1, axis=0)  # row j <- p2[j + 1]
    # Single dense, unmasked (m, cp) store.
    o_ref[...] = (acc + p2 + b_ref[...]).astype(o_ref.dtype)


# --------------------------- tiling / pallas_call ---------------------------


def _vmem_est(t_ho, wq, cp, out_bytes):
    """Conservative per-step VMEM footprint for a row tile of t_ho output rows."""
    m = t_ho * wq
    return (2 * m * 6 * cp * 2          # input block, double-buffered, bf16
            + 2 * 9 * cp * cp * 2       # resident wa+wb (assume 2 buffers)
            + 2 * m * cp * out_bytes    # output block, double-buffered
            + 3 * m * cp * 4)           # live f32 partials (acc, p2, sum)


def _choose_row_tile(n, ho, wq, cp, out_bytes, budget_bytes):
    """Largest legal row tile that fits the VMEM budget, preferring tilings that
    leave >= 2 grid steps so the parallel grid can shard across TensorCores."""
    legal = [t for t in range(1, ho + 1)
             if ho % t == 0 and ((t * wq) % 8 == 0 or t == ho)]
    fits = [t for t in legal if _vmem_est(t, wq, cp, out_bytes) <= budget_bytes]
    multi = [t for t in fits if n * (ho // t) >= 2]
    if multi:
        return max(multi)
    if fits:
        return max(fits)
    return min(legal, key=lambda t: _vmem_est(t, wq, cp, out_bytes))


def _conv3x3s2_pallas(x_packed, wa, wb, bvec, *, n, ho, wq, cp, t_ho,
                      out_dtype, vmem_limit):
    m = t_ho * wq
    kernel = functools.partial(_downsample_conv_kernel, m=m, cp=cp)
    # TODO(synk): pipeline_mode=pl.Buffered(1) on the weight/bias specs (constant
    # index maps, never re-fetched) would drop their second pipeline buffer; only
    # matters once cp >= 512 on v7x's 64 MiB VMEM.
    return pl.pallas_call(
        kernel,
        out_shape=jax.ShapeDtypeStruct((n, ho * wq, cp), out_dtype),
        grid=(n, ho // t_ho),
        in_specs=[
            pl.BlockSpec((None, m, 6 * cp), lambda b, i: (b, i, 0)),
            pl.BlockSpec((6 * cp, cp), lambda b, i: (0, 0)),   # resident weights
            pl.BlockSpec((3 * cp, cp), lambda b, i: (0, 0)),   # resident weights
            pl.BlockSpec((1, cp), lambda b, i: (0, 0)),        # resident bias
        ],
        out_specs=pl.BlockSpec((None, m, cp), lambda b, i: (b, i, 0)),
        compiler_params=pltpu.CompilerParams(
            dimension_semantics=("parallel", "parallel"),
            vmem_limit_bytes=int(vmem_limit),
        ),
    )(x_packed, wa, wb, bvec)


# ----------------------------- Module wrapper -------------------------------


def downsample_init_params(key, in_ch):
    """nn.Conv2d(in_ch, in_ch, 3) with xavier_uniform_ weight, zero bias."""
    fan_in = in_ch * 3 * 3
    fan_out = in_ch * 3 * 3
    a = (6.0 / (fan_in + fan_out)) ** 0.5
    weight = jax.random.uniform(key, (in_ch, in_ch, 3, 3), jnp.float32,
                                minval=-a, maxval=a)  # OIHW, like PyTorch
    bias = jnp.zeros((in_ch,), jnp.float32)
    return weight, bias


def downsample_forward(x_nchw, temb, weight_oihw, bias, *,
                       compute_dtype=jnp.bfloat16, out_dtype=jnp.float32):
    """Forward of DownSample. `temb` is accepted but unused (as in PyTorch)."""
    del temb
    n, c, h, w = x_nchw.shape
    ho = (h - 1) // 2 + 1
    wo = (w - 1) // 2 + 1
    wq = wo + 1                       # column pairs per output row (incl. overflow)
    # NOTE: channels are padded to a multiple of 128 for lane-dense MXU tiles.
    # For C << 128 (e.g. the C=4 smoke test) lane/MXU occupancy is only C/128;
    # pack spatial positions into the lane dim instead if small-C matters.
    cp = _round_up(c, 128)

    # ---- layout glue (transpose + pad + cast + strided row gather + fold) ----
    x = jnp.transpose(x_nchw, (0, 2, 3, 1))                       # NHWC
    pad_b = 2 * ho - h                # 0 if h even, 1 if h odd
    pad_r = 2 * wo + 1 - w            # 1 if w even, 2 if w odd
    x = jnp.pad(x, ((0, 0), (1, pad_b), (1, pad_r), (0, cp - c)))
    x = x.astype(compute_dtype)                                   # (n, 2ho+1, 2wq, cp)

    # Row tap kh reads padded row 2r+kh; fold even/odd padded columns into lanes
    # and pack the 6 blocks as [E0 E1 E2 O0 O1 O2] along the lane dim.
    blocks = []
    for kh in range(3):
        plane = x[:, kh:kh + 2 * ho - 1:2]                        # (n, ho, 2wq, cp)
        blocks.append(plane.reshape(n, ho * wq, 2, cp))
    x_packed = jnp.concatenate(
        [blocks[0][:, :, 0], blocks[1][:, :, 0], blocks[2][:, :, 0],
         blocks[0][:, :, 1], blocks[1][:, :, 1], blocks[2][:, :, 1]],
        axis=-1)                                                  # (n, ho*wq, 6cp)

    # Weights OIHW -> (kh, kw, in, out), channel-padded, packed along K.
    wt = jnp.transpose(weight_oihw, (2, 3, 1, 0))
    wt = jnp.pad(wt, ((0, 0), (0, 0), (0, cp - c), (0, cp - c)))  # (3, 3, cp, cp)
    wa = jnp.concatenate([wt[0, 0], wt[1, 0], wt[2, 0],
                          wt[0, 1], wt[1, 1], wt[2, 1]], axis=0).astype(compute_dtype)
    wb = jnp.concatenate([wt[0, 2], wt[1, 2], wt[2, 2]], axis=0).astype(compute_dtype)
    bvec = jnp.pad(bias, (0, cp - c)).reshape(1, cp).astype(jnp.float32)

    # ---- generation-aware tiling / VMEM budgets ----
    out_bytes = jnp.dtype(out_dtype).itemsize
    cap = _vmem_capacity_bytes()
    vmem_limit = min(cap * 3 // 4, 112 * 1024 * 1024)
    t_ho = _choose_row_tile(n, ho, wq, cp, out_bytes,
                            budget_bytes=vmem_limit * 4 // 5)
    vmem_limit = max(vmem_limit,
                     min(cap, _vmem_est(t_ho, wq, cp, out_bytes) + (8 << 20)))

    out = _conv3x3s2_pallas(x_packed, wa, wb, bvec,
                            n=n, ho=ho, wq=wq, cp=cp, t_ho=t_ho,
                            out_dtype=out_dtype, vmem_limit=vmem_limit)

    out = out.reshape(n, ho, wq, cp)[:, :, :wo, :c]               # drop overflow/pads
    return jnp.transpose(out, (0, 3, 1, 2))                       # NCHW


# --------------------------------- main -------------------------------------


def _reference_conv(x, weight, bias):
    c = weight.shape[0]
    y = lax.conv_general_dilated(
        x, weight, window_strides=(2, 2), padding=((1, 1), (1, 1)),
        dimension_numbers=("NCHW", "OIHW", "NCHW"),
        precision=lax.Precision.HIGHEST)
    return y + bias.reshape(1, c, 1, 1)


if __name__ == "__main__":
    key = jax.random.PRNGKey(0)
    k_w, k_x, k_t = jax.random.split(key, 3)

    fwd = jax.jit(downsample_forward)

    # ---- main smoke test ----
    N, C, H, W = 2, 4, 16, 16
    weight, bias = downsample_init_params(k_w, C)
    x = jax.random.normal(k_x, (N, C, H, W), jnp.float32)
    temb = jax.random.normal(k_t, (N, 32), jnp.float32)   # unused by forward

    y = jax.block_until_ready(fwd(x, temb, weight, bias))
    assert y.shape == (N, C, H // 2, W // 2), y.shape

    # Reference 1: identical math (bf16-rounded operands, f32 accumulation).
    xr = x.astype(jnp.bfloat16).astype(jnp.float32)
    wr = weight.astype(jnp.bfloat16).astype(jnp.float32)
    y_ref = _reference_conv(xr, wr, bias)
    err = float(jnp.max(jnp.abs(y - y_ref)))
    assert bool(jnp.allclose(y, y_ref, atol=2e-3, rtol=2e-3)), err

    # Reference 2: full-f32 conv (module semantics); loose tol for bf16 MXU.
    y_f32 = _reference_conv(x, weight, bias)
    err32 = float(jnp.max(jnp.abs(y - y_f32)))
    assert bool(jnp.allclose(y, y_f32, atol=1e-1, rtol=1e-1)), err32

    # ---- odd-H / odd-W / non-square / multi-row-tile check ----
    N2, C2, H2, W2 = 1, 4, 19, 13
    weight2, bias2 = downsample_init_params(jax.random.PRNGKey(1), C2)
    x2 = jax.random.normal(jax.random.PRNGKey(2), (N2, C2, H2, W2), jnp.float32)
    y2 = jax.block_until_ready(fwd(x2, temb[:1], weight2, bias2))
    assert y2.shape == (N2, C2, (H2 + 1) // 2, (W2 + 1) // 2), y2.shape
    y2_ref = _reference_conv(x2.astype(jnp.bfloat16).astype(jnp.float32),
                             weight2.astype(jnp.bfloat16).astype(jnp.float32),
                             bias2)
    err2 = float(jnp.max(jnp.abs(y2 - y2_ref)))
    assert bool(jnp.allclose(y2, y2_ref, atol=2e-3, rtol=2e-3)), err2

    print("KERNEL_OK")
</pallas_src>

<mosaic_0001>
module attributes {stable_mosaic.version = 11 : i64} {
  func.func @_downsample_conv_kernel(%arg0: i32, %arg1: i32, %arg2: memref<1x72x768xbf16, #tpu.memory_space<vmem>>, %arg3: memref<768x128xbf16, #tpu.memory_space<vmem>>, %arg4: memref<384x128xbf16, #tpu.memory_space<vmem>>, %arg5: memref<1x128xf32, #tpu.memory_space<vmem>>, %arg6: memref<1x72x128xf32, #tpu.memory_space<vmem>>) attributes {dimension_semantics = [#tpu.dimension_semantics<parallel>, #tpu.dimension_semantics<parallel>], iteration_bounds = array<i64: 2, 1>, scalar_prefetch = 0 : i64, scratch_operands = 0 : i64, tpu.core_type = #tpu.core_type<tc>, window_params = [{transform_indices = @transform_0, window_bounds = array<i64: 1, 72, 768>}, {pipeline_mode = #tpu.pipeline_mode<synchronous>, transform_indices = @transform_1, window_bounds = array<i64: 768, 128>}, {pipeline_mode = #tpu.pipeline_mode<synchronous>, transform_indices = @transform_2, window_bounds = array<i64: 384, 128>}, {pipeline_mode = #tpu.pipeline_mode<synchronous>, transform_indices = @transform_3, window_bounds = array<i64: 1, 128>}, {transform_indices = @transform_4, window_bounds = array<i64: 1, 72, 128>}]} {
    %c0 = arith.constant 0 : index
    %c0_0 = arith.constant 0 : index
    %c0_1 = arith.constant 0 : index
    %0 = vector.load %arg2[%c0, %c0_0, %c0_1] : memref<1x72x768xbf16, #tpu.memory_space<vmem>>, vector<1x72x768xbf16>
    %1 = vector.shape_cast %0 : vector<1x72x768xbf16> to vector<72x768xbf16>
    %c0_2 = arith.constant 0 : index
    %c0_3 = arith.constant 0 : index
    %2 = vector.load %arg3[%c0_2, %c0_3] : memref<768x128xbf16, #tpu.memory_space<vmem>>, vector<768x128xbf16>
    %cst = arith.constant dense<0.000000e+00> : vector<72x128xf32>
    %3 = tpu.matmul %1, %2, %cst {dimension_numbers = #tpu.dot_dimension_numbers<[1], [0], [0], [1], [0, 0, 1, 1], [], []>} : vector<72x768xbf16>, vector<768x128xbf16>, vector<72x128xf32> -> vector<72x128xf32>
    %4 = vector.extract_strided_slice %1 {offsets = [0, 0], sizes = [72, 384], strides = [1, 1]} : vector<72x768xbf16> to vector<72x384xbf16>
    %c0_4 = arith.constant 0 : index
    %c0_5 = arith.constant 0 : index
    %5 = vector.load %arg4[%c0_4, %c0_5] : memref<384x128xbf16, #tpu.memory_space<vmem>>, vector<384x128xbf16>
    %cst_6 = arith.constant dense<0.000000e+00> : vector<72x128xf32>
    %6 = tpu.matmul %4, %5, %cst_6 {dimension_numbers = #tpu.dot_dimension_numbers<[1], [0], [0], [1], [0, 0, 1, 1], [], []>} : vector<72x384xbf16>, vector<384x128xbf16>, vector<72x128xf32> -> vector<72x128xf32>
    %c71_i32 = arith.constant 71 : i32
    %7 = tpu.dynamic_rotate %6 by %c71_i32 dim 0 : vector<72x128xf32>, i32 -> vector<72x128xf32>
    %8 = arith.addf %3, %7 : vector<72x128xf32>
    %c0_7 = arith.constant 0 : index
    %c0_8 = arith.constant 0 : index
    %9 = vector.load %arg5[%c0_7, %c0_8] : memref<1x128xf32, #tpu.memory_space<vmem>>, vector<1x128xf32>
    %10 = vector.broadcast %9 : vector<1x128xf32> to vector<72x128xf32>
    %11 = arith.addf %8, %10 : vector<72x128xf32>
    %c0_9 = arith.constant 0 : index
    %c0_10 = arith.constant 0 : index
    %c0_11 = arith.constant 0 : index
    %12 = vector.load %arg6[%c0_9, %c0_10, %c0_11] : memref<1x72x128xf32, #tpu.memory_space<vmem>>, vector<1x72x128xf32>
    %13 = vector.shape_cast %12 : vector<1x72x128xf32> to vector<72x128xf32>
    %14 = vector.shape_cast %11 : vector<72x128xf32> to vector<1x72x128xf32>
    tpu.vector_store %arg6[%c0_9, %c0_10, %c0_11], %14 {strides = array<i32>} : memref<1x72x128xf32, #tpu.memory_space<vmem>>, vector<1x72x128xf32>,
    return
  }
  func.func @transform_0(%arg0: i32, %arg1: i32) -> (i32, i32, i32) {
    %c0_i32 = arith.constant 0 : i32
    %c0_i32_0 = arith.constant 0 : i32
    return %arg0, %arg1, %c0_i32 : i32, i32, i32
  }
  func.func @transform_1(%arg0: i32, %arg1: i32) -> (i32, i32) {
    %c0_i32 = arith.constant 0 : i32
    %c0_i32_0 = arith.constant 0 : i32
    %c0_i32_1 = arith.constant 0 : i32
    return %c0_i32, %c0_i32_0 : i32, i32
  }
  func.func @transform_2(%arg0: i32, %arg1: i32) -> (i32, i32) {
    %c0_i32 = arith.constant 0 : i32
    %c0_i32_0 = arith.constant 0 : i32
    %c0_i32_1 = arith.constant 0 : i32
    return %c0_i32, %c0_i32_0 : i32, i32
  }
  func.func @transform_3(%arg0: i32, %arg1: i32) -> (i32, i32) {
    %c0_i32 = arith.constant 0 : i32
    %c0_i32_0 = arith.constant 0 : i32
    %c0_i32_1 = arith.constant 0 : i32
    return %c0_i32, %c0_i32_0 : i32, i32
  }
  func.func @transform_4(%arg0: i32, %arg1: i32) -> (i32, i32, i32) {
    %c0_i32 = arith.constant 0 : i32
    %c0_i32_0 = arith.constant 0 : i32
    return %arg0, %arg1, %c0_i32 : i32, i32, i32
  }
}

</mosaic_0001>

<llo_original>
// kernel: downsample_forward.1
$region0: #{downsample_forward.1}
  #allocation0 [shape = 'u32[]', space=smem, size = 0x4, offset = 0x4, fixed_abs, tag = 'smem constant byte address 0x4 - core index']
  #allocation1 [shape = 'u32[144,128]{1,0:T(1,128)}', space=vmem, size = 0x12000, scoped, tag = 'internal scratch']
  %s0 = inlined_call_operand.vmem [shape: bf16[2,72,768], index: 0, kind: input, shape index: {}]
  %s1 = inlined_call_operand.vmem [shape: bf16[768,128], index: 1, kind: input, shape index: {}]
  %s2 = inlined_call_operand.vmem [shape: bf16[384,128], index: 2, kind: input, shape index: {}]
  %s3 = inlined_call_operand.vmem [shape: f32[1,128], index: 3, kind: input, shape index: {}]
  %s4 = inlined_call_operand.vmem [shape: f32[2,72,128], index: 4, kind: output, shape index: {}]
  %s5 = sld [smem:[#allocation0]]
  $region49: #{downsample_forward.1} parent=0
    _
  %s7 = ssub.s32 1, %s5
  %s8 = scalar_select 0, %s7, %s5
  loop: start=0, step=1, limit=4
  $region2: #{downsample_forward.1} parent=0 // loop_pre_header
    _
  $region3: #{downsample_forward.1} parent=0 // loop_header
    %s10 = sphi 0, %s14
    %p11 = scmp.ge.s32.totalorder %s10, 4
    %s17 = sphi 0, %s29
    %s18 = sphi 0, %s25
    %s19 = sphi 0, %s17
    %s20 = sphi 0, %s18
    %s21 = sphi 0, %s19
    %s22 = sphi 0, %s20
    %s34 = sphi 0, %s36
    %s37 = sphi 0, %s34
    %s38 = sphi 0, %s37
    %s54 = sphi 0, %s38
    %s58 = sphi 0, %s58
    %s60 = sphi 0, %s58
    %s61 = sphi 0, %s60
    %s75 = sphi 0, %s61
    %s79 = sphi 0, %s79
    %s81 = sphi 0, %s79
    %s82 = sphi 0, %s81
    %s96 = sphi 0, %s82
    %s100 = sphi 0, %s100
    %s102 = sphi 0, %s100
    %s103 = sphi 0, %s102
    %s117 = sphi 0, %s103
    %s125 = sphi 0, %s127
    %s128 = sphi 0, %s125
    %s129 = sphi 0, %s128
    %s145 = sphi 0, %s129
  $region4: #{downsample_forward.1} parent=0 // loop_header_branch
    %13 = sbr.rel (%p11) target = $region8
  $region5: #{downsample_forward.1} parent=0 // loop_body
    %s15 = ssub.s32 %s10, 1
    %s16 = ssub.s32 %s10, 2
    %s23 = sadd.s32 1, %s18
    %p24 = scmp.ge.s32.totalorder %s23, 1
    %s25 = scalar_select %p24, 0, %s23
    %s26 = sadd.s32 1, %s17
    %s27 = scalar_select %p24, %s26, %s17
    %p28 = scmp.ge.s32.totalorder %s27, 2
    %s29 = scalar_select %p28, 0, %s27
    %s30 = ssub.s32 %s17, %s29
    %s31 = ssub.s32 %s18, %s25
    %s32 = sor.u32 %s30, %s31
    %p33 = scmp.eq.s32.totalorder %s32, 0
    %s35 = sadd.s32 %s34, 1
    %s36 = scalar_select %p33, %s34, %s35
    %p39 = pneg %p33
    %p40 = scmp.eq.s32.totalorder %s10, 1
    %p41 = por %p39, %p40
    %p42 = scmp.ne.s32.totalorder %s34, %s37
    %p43 = scmp.eq.s32.totalorder %s10, 0
    %p44 = por %p42, %p43
    %p45 = scmp.ne.s32.totalorder %s34, %s37
    %p46 = scmp.eq.s32.totalorder %s15, 1
    %p47 = por %p45, %p46
    %p48 = scmp.ne.s32.totalorder %s37, %s38
    %p49 = scmp.eq.s32.totalorder %s15, 0
    %p50 = por %p48, %p49
    %p51 = scmp.ne.s32.totalorder %s37, %s38
    %p52 = scmp.eq.s32.totalorder %s16, 1
    %p53 = por %p51, %p52
    %p55 = scmp.ne.s32.totalorder %s38, %s54
    %p56 = scmp.eq.s32.totalorder %s16, 0
    %p57 = por %p55, %p56
    %s59 = sadd.s32 %s58, 1
    %p62 = scmp.eq.s32.totalorder %s10, 1
    %p63 = scmp.ne.s32.totalorder %s58, %s60
    %p64 = scmp.eq.s32.totalorder %s10, 0
    %p65 = por %p63, %p64
    %p66 = scmp.ne.s32.totalorder %s58, %s60
    %p67 = scmp.eq.s32.totalorder %s15, 1
    %p68 = por %p66, %p67
    %p69 = scmp.ne.s32.totalorder %s60, %s61
    %p70 = scmp.eq.s32.totalorder %s15, 0
    %p71 = por %p69, %p70
    %p72 = scmp.ne.s32.totalorder %s60, %s61
    %p73 = scmp.eq.s32.totalorder %s16, 1
    %p74 = por %p72, %p73
    %p76 = scmp.ne.s32.totalorder %s61, %s75
    %p77 = scmp.eq.s32.totalorder %s16, 0
    %p78 = por %p76, %p77
    %s80 = sadd.s32 %s79, 1
    %p83 = scmp.eq.s32.totalorder %s10, 1
    %p84 = scmp.ne.s32.totalorder %s79, %s81
    %p85 = scmp.eq.s32.totalorder %s10, 0
    %p86 = por %p84, %p85
    %p87 = scmp.ne.s32.totalorder %s79, %s81
    %p88 = scmp.eq.s32.totalorder %s15, 1
    %p89 = por %p87, %p88
    %p90 = scmp.ne.s32.totalorder %s81, %s82
    %p91 = scmp.eq.s32.totalorder %s15, 0
    %p92 = por %p90, %p91
    %p93 = scmp.ne.s32.totalorder %s81, %s82
    %p94 = scmp.eq.s32.totalorder %s16, 1
    %p95 = por %p93, %p94
    %p97 = scmp.ne.s32.totalorder %s82, %s96
    %p98 = scmp.eq.s32.totalorder %s16, 0
    %p99 = por %p97, %p98
    %s101 = sadd.s32 %s100, 1
    %p104 = scmp.eq.s32.totalorder %s10, 1
    %p105 = scmp.ne.s32.totalorder %s100, %s102
    %p106 = scmp.eq.s32.totalorder %s10, 0
    %p107 = por %p105, %p106
    %p108 = scmp.ne.s32.totalorder %s100, %s102
    %p109 = scmp.eq.s32.totalorder %s15, 1
    %p110 = por %p108, %p109
    %p111 = scmp.ne.s32.totalorder %s102, %s103
    %p112 = scmp.eq.s32.totalorder %s15, 0
    %p113 = por %p111, %p112
    %p114 = scmp.ne.s32.totalorder %s102, %s103
    %p115 = scmp.eq.s32.totalorder %s16, 1
    %p116 = por %p114, %p115
    %p118 = scmp.ne.s32.totalorder %s103, %s117
    %p119 = scmp.eq.s32.totalorder %s16, 0
    %p120 = por %p118, %p119
    %s121 = ssub.s32 %s17, %s29
    %s122 = ssub.s32 %s18, %s25
    %s123 = sor.u32 %s121, %s122
    %p124 = scmp.eq.s32.totalorder %s123, 0
    %s126 = sadd.s32 %s125, 1
    %s127 = scalar_select %p124, %s125, %s126
    %p130 = pneg %p124
    %p131 = scmp.eq.s32.totalorder %s10, 1
    %p132 = por %p130, %p131
    %p133 = scmp.ne.s32.totalorder %s125, %s128
    %p134 = scmp.eq.s32.totalorder %s10, 0
    %p135 = por %p133, %p134
    %p136 = scmp.ne.s32.totalorder %s125, %s128
    %p137 = scmp.eq.s32.totalorder %s15, 1
    %p138 = por %p136, %p137
    %p139 = scmp.ne.s32.totalorder %s128, %s129
    %p140 = scmp.eq.s32.totalorder %s15, 0
    %p141 = por %p139, %p140
    %p142 = scmp.ne.s32.totalorder %s128, %s129
    %p143 = scmp.eq.s32.totalorder %s16, 1
    %p144 = por %p142, %p143
    %p146 = scmp.ne.s32.totalorder %s129, %s145
    %p147 = scmp.eq.s32.totalorder %s16, 0
    %p148 = por %p146, %p147
    %p149 = scmp.le.s32.totalorder 1, %s10
    %p150 = scmp.lt.s32.totalorder %s10, 3
    %p151 = pnand %p149, %p150
    %p152 = pneg %p151
    // Predicated region
    $region9: #{downsample_forward.1} parent=5 // pred_check
      _
    $region10: #{downsample_forward.1} parent=5 // pred_check_branch
      %154 = sbr.rel (%p151) target = $region12
    $region11: #{downsample_forward.1} parent=5 // pred_region
      %s155 = ssub.s32 %s10, 1
      // Predicated region
      $region13: #{downsample_forward.1} parent=11 // pred_check
        %p156 = pneg %p71
      $region14: #{downsample_forward.1} parent=11 // pred_check_branch
        %158 = sbr.rel (%p156) target = $region16
      $region15: #{downsample_forward.1} parent=11 // pred_region
        _
      $region16: #{downsample_forward.1} parent=11 // pred_fallthru
        _
      // Predicated region
      $region17: #{downsample_forward.1} parent=11 // pred_check
        %p159 = pneg %p92
      $region18: #{downsample_forward.1} parent=11 // pred_check_branch
        %161 = sbr.rel (%p159) target = $region20
      $region19: #{downsample_forward.1} parent=11 // pred_region
        _
      $region20: #{downsample_forward.1} parent=11 // pred_fallthru
        _
      // Predicated region
      $region21: #{downsample_forward.1} parent=11 // pred_check
        %p162 = pneg %p113
      $region22: #{downsample_forward.1} parent=11 // pred_check_branch
        %164 = sbr.rel (%p162) target = $region24
      $region23: #{downsample_forward.1} parent=11 // pred_region
        _
      $region24: #{downsample_forward.1} parent=11 // pred_fallthru
        _
    $region12: #{downsample_forward.1} parent=5 // pred_fallthru
      _
    %p165 = scmp.lt.s32.totalorder %s10, 2
    // Predicated region
    $region25: #{downsample_forward.1} parent=5 // pred_check
      %p166 = pneg %p165
    $region26: #{downsample_forward.1} parent=5 // pred_check_branch
      %168 = sbr.rel (%p166) target = $region28
    $region27: #{downsample_forward.1} parent=5 // pred_region
      // Predicated region
      $region29: #{downsample_forward.1} parent=27 // pred_check
        %p169 = pneg %p44
      $region30: #{downsample_forward.1} parent=27 // pred_check_branch
        %171 = sbr.rel (%p169) target = $region32
      $region31: #{downsample_forward.1} parent=27 // pred_region
        %s172 = smul.u32 9, %s18
        %p173 = scmp.lt.s32.totalorder %s17, 1
        %s174 = scalar_select %p173, %s17, 1
        %p175 = scmp.lt.s32.totalorder %s172, 8
        %s176 = scalar_select %p175, %s172, 8
        %s177 = smul.addr %s176, 6
        %s178 = smul.addr %s174, 54
        %s179 = sadd.s32 %s177, %s178
        %s180 = smul.addr %s179, 4
        %s181 = scalar_lea.vmem %s0, %s180
        %s182 = smul.u32 9, %s18
      $region32: #{downsample_forward.1} parent=27 // pred_fallthru
        _
    $region28: #{downsample_forward.1} parent=5 // pred_fallthru
      _
    %p183 = scmp.le.s32.totalorder 1, %s10
    %p184 = scmp.lt.s32.totalorder %s10, 3
    %p185 = pnand %p183, %p184
    %p186 = pneg %p185
    // Predicated region
    $region33: #{downsample_forward.1} parent=5 // pred_check
      _
    $region34: #{downsample_forward.1} parent=5 // pred_check_branch
      %188 = sbr.rel (%p185) target = $region36
    $region35: #{downsample_forward.1} parent=5 // pred_region
      %s189 = ssub.s32 %s10, 1
      %s190 = smul.u32 9, %s20
      %p191 = scmp.lt.s32.totalorder %s19, 1
      %s192 = scalar_select %p191, %s19, 1
      %p193 = scmp.lt.s32.totalorder %s190, 8
      %s194 = scalar_select %p193, %s190, 8
      %s195 = smul.addr %s194, 6
      %s196 = smul.addr %s192, 54
      %s197 = sadd.s32 %s195, %s196
      %s198 = smul.addr %s197, 4
      %s199 = scalar_lea.vmem %s0, %s198
      %p200 = pneg %p50
      %p201 = pneg %p47
      %p202 = pneg %p71
      %p203 = pneg %p68
      %p204 = pneg %p92
      %p205 = pneg %p89
      %p206 = pneg %p113
      %p207 = pneg %p110
      %p208 = pneg %p141
      %p209 = pneg %p138
      %s210 = smul.u32 9, %s20
      %p211 = scmp.lt.s32.totalorder %s19, 1
      %s212 = scalar_select %p211, %s19, 1
      %p213 = scmp.lt.s32.totalorder %s210, 8
      %s214 = scalar_select %p213, %s210, 8
      %s215 = smul.addr %s212, 9
      %s216 = sadd.s32 %s214, %s215
      %s217 = smul.addr %s216, 8
      %s218 = scalar_lea.vmem %s4, %s217
      %s219 = smul.u32 9, %s20
      %p220 = scmp.lt.s32.totalorder %s19, 1
      %s221 = scalar_select %p220, %s19, 1
      %p222 = scmp.lt.s32.totalorder %s219, 8
      %s223 = scalar_select %p222, %s219, 8
      %s224 = smul.addr %s223, 6
      %s225 = smul.addr %s221, 54
      %s226 = sadd.s32 %s224, %s225
      %s227 = smul.addr %s226, 4
      %s228 = scalar_lea.vmem %s0, %s227
      %s229 = smul.u32 9, %s20
      %s230 = smul.u32 9, %s20
      %p231 = scmp.lt.s32.totalorder %s19, 1
      %s232 = scalar_select %p231, %s19, 1
      %p233 = scmp.lt.s32.totalorder %s230, 8
      %s234 = scalar_select %p233, %s230, 8
      %s235 = smul.addr %s232, 9
      %s236 = sadd.s32 %s234, %s235
      %s237 = smul.addr %s236, 8
      %s238 = scalar_lea.vmem %s4, %s237
      %s239 = smul.u32 9, %s20
      %v241 = vld [vmem:[%s228] sm:$0xff]
      %v242 = vld [vmem:[%s228 + $0x8] sm:$0xff]
      %v243 = vld [vmem:[%s228 + $0x10] sm:$0xff]
      %v244 = vld [vmem:[%s228 + $0x18] sm:$0xff]
      %v245 = vld [vmem:[%s228 + $0x20] sm:$0xff]
      %v246 = vld [vmem:[%s228 + $0x28] sm:$0xff]
      %v247 = vld [vmem:[%s228 + $0x30] sm:$0xff]
      %v248 = vld [vmem:[%s228 + $0x38] sm:$0xff]
      %v249 = vld [vmem:[%s228 + $0x40] sm:$0xff]
      %v250 = vld [vmem:[%s228 + $0x48] sm:$0xff]
      %v251 = vld [vmem:[%s228 + $0x50] sm:$0xff]
      %v252 = vld [vmem:[%s228 + $0x58] sm:$0xff]
      %v253 = vld [vmem:[%s228 + $0x60] sm:$0xff]
      %v254 = vld [vmem:[%s228 + $0x68] sm:$0xff]
      %v255 = vld [vmem:[%s228 + $0x70] sm:$0xff]
      %v256 = vld [vmem:[%s228 + $0x78] sm:$0xff]
      %v257 = vld [vmem:[%s228 + $0x80] sm:$0xff]
      %v258 = vld [vmem:[%s228 + $0x88] sm:$0xff]
      %v259 = vld [vmem:[%s228 + $0x90] sm:$0xff]
      %v260 = vld [vmem:[%s228 + $0x98] sm:$0xff]
      %v261 = vld [vmem:[%s228 + $0xa0] sm:$0xff]
      %v262 = vld [vmem:[%s228 + $0xa8] sm:$0xff]
      %v263 = vld [vmem:[%s228 + $0xb0] sm:$0xff]
      %v264 = vld [vmem:[%s228 + $0xb8] sm:$0xff]
      %v265 = vld [vmem:[%s228 + $0xc0] sm:$0xff]
      %v266 = vld [vmem:[%s228 + $0xc8] sm:$0xff]
      %v267 = vld [vmem:[%s228 + $0xd0] sm:$0xff]
      %v268 = vld [vmem:[%s1] sm:$0xf]
      %v269 = vld [vmem:[%s1 + $0x4] sm:$0xf]
      %v270 = vld [vmem:[%s1 + $0x8] sm:$0xf]
      %v271 = vld [vmem:[%s1 + $0xc] sm:$0xf]
      %v272 = vld [vmem:[%s1 + $0x10] sm:$0xf]
      %v273 = vld [vmem:[%s1 + $0x14] sm:$0xf]
      %v274 = vld [vmem:[%s1 + $0x18] sm:$0xf]
      %v275 = vld [vmem:[%s1 + $0x1c] sm:$0xf]
      %v276 = vld [vmem:[%s1 + $0x20] sm:$0xf]
      %v277 = vld [vmem:[%s1 + $0x24] sm:$0xf]
      %v278 = vld [vmem:[%s1 + $0x28] sm:$0xf]
      %v279 = vld [vmem:[%s1 + $0x2c] sm:$0xf]
      %v280 = vld [vmem:[%s1 + $0x30] sm:$0xf]
      %v281 = vld [vmem:[%s1 + $0x34] sm:$0xf]
      %v282 = vld [vmem:[%s1 + $0x38] sm:$0xf]
      %v283 = vld [vmem:[%s1 + $0x3c] sm:$0xf]
      %v284 = vld [vmem:[%s1 + $0x40] sm:$0xf]
      %v285 = vld [vmem:[%s1 + $0x44] sm:$0xf]
      %v286 = vld [vmem:[%s1 + $0x48] sm:$0xf]
      %v287 = vld [vmem:[%s1 + $0x4c] sm:$0xf]
      %v288 = vld [vmem:[%s1 + $0x50] sm:$0xf]
      %v289 = vld [vmem:[%s1 + $0x54] sm:$0xf]
      %v290 = vld [vmem:[%s1 + $0x58] sm:$0xf]
      %v291 = vld [vmem:[%s1 + $0x5c] sm:$0xf]
      %v292 = vld [vmem:[%s1 + $0x60] sm:$0xf]
      %v293 = vld [vmem:[%s1 + $0x64] sm:$0xf]
      %v294 = vld [vmem:[%s1 + $0x68] sm:$0xf]
      %v295 = vld [vmem:[%s1 + $0x6c] sm:$0xf]
      %v296 = vld [vmem:[%s1 + $0x70] sm:$0xf]
      %v297 = vld [vmem:[%s1 + $0x74] sm:$0xf]
      %v298 = vld [vmem:[%s1 + $0x78] sm:$0xf]
      %v299 = vld [vmem:[%s1 + $0x7c] sm:$0xf]
      %v300 = vld [vmem:[%s1 + $0x80] sm:$0xf]
      %v301 = vld [vmem:[%s1 + $0x84] sm:$0xf]
      %v302 = vld [vmem:[%s1 + $0x88] sm:$0xf]
      %v303 = vld [vmem:[%s1 + $0x8c] sm:$0xf]
      %v304 = vld [vmem:[%s1 + $0x90] sm:$0xf]
      %v305 = vld [vmem:[%s1 + $0x94] sm:$0xf]
      %v306 = vld [vmem:[%s1 + $0x98] sm:$0xf]
      %v307 = vld [vmem:[%s1 + $0x9c] sm:$0xf]
      %v308 = vld [vmem:[%s1 + $0xa0] sm:$0xf]
      %v309 = vld [vmem:[%s1 + $0xa4] sm:$0xf]
      %v310 = vld [vmem:[%s1 + $0xa8] sm:$0xf]
      %v311 = vld [vmem:[%s1 + $0xac] sm:$0xf]
      %v312 = vld [vmem:[%s1 + $0xb0] sm:$0xf]
      %v313 = vld [vmem:[%s1 + $0xb4] sm:$0xf]
      %v314 = vld [vmem:[%s1 + $0xb8] sm:$0xf]
      %v315 = vld [vmem:[%s1 + $0xbc] sm:$0xf]
      %v316 = vld [vmem:[%s1 + $0xc0] sm:$0xf]
      %v317 = vld [vmem:[%s1 + $0xc4] sm:$0xf]
      %v318 = vld [vmem:[%s1 + $0xc8] sm:$0xf]
      %v319 = vld [vmem:[%s1 + $0xcc] sm:$0xf]
      %v320 = vld [vmem:[%s1 + $0xd0] sm:$0xf]
      %v321 = vld [vmem:[%s1 + $0xd4] sm:$0xf]
      %v322 = vld [vmem:[%s1 + $0xd8] sm:$0xf]
      %v323 = vld [vmem:[%s1 + $0xdc] sm:$0xf]
      %v324 = vld [vmem:[%s1 + $0xe0] sm:$0xf]
      %v325 = vld [vmem:[%s1 + $0xe4] sm:$0xf]
      %v326 = vld [vmem:[%s1 + $0xe8] sm:$0xf]
      %v327 = vld [vmem:[%s1 + $0xec] sm:$0xf]
      %v328 = vld [vmem:[%s1 + $0xf0] sm:$0xf]
      %v329 = vld [vmem:[%s1 + $0xf4] sm:$0xf]
      %v330 = vld [vmem:[%s1 + $0xf8] sm:$0xf]
      %v331 = vld [vmem:[%s1 + $0xfc] sm:$0xf]
      %v332 = vld [vmem:[%s1 + $0x100] sm:$0xf]
      %v333 = vld [vmem:[%s1 + $0x104] sm:$0xf]
      %v334 = vld [vmem:[%s1 + $0x108] sm:$0xf]
      %v335 = vld [vmem:[%s1 + $0x10c] sm:$0xf]
      %v336 = vld [vmem:[%s1 + $0x110] sm:$0xf]
      %v337 = vld [vmem:[%s1 + $0x114] sm:$0xf]
      %v338 = vld [vmem:[%s1 + $0x118] sm:$0xf]
      %v339 = vld [vmem:[%s1 + $0x11c] sm:$0xf]
      %v340 = vld [vmem:[%s1 + $0x120] sm:$0xf]
      %v341 = vld [vmem:[%s1 + $0x124] sm:$0xf]
      %v342 = vld [vmem:[%s1 + $0x128] sm:$0xf]
      %v343 = vld [vmem:[%s1 + $0x12c] sm:$0xf]
      %v344 = vld [vmem:[%s1 + $0x130] sm:$0xf]
      %v345 = vld [vmem:[%s1 + $0x134] sm:$0xf]
      %v346 = vld [vmem:[%s1 + $0x138] sm:$0xf]
      %v347 = vld [vmem:[%s1 + $0x13c] sm:$0xf]
      %v348 = vld [vmem:[%s1 + $0x140] sm:$0xf]
      %v349 = vld [vmem:[%s1 + $0x144] sm:$0xf]
      %v350 = vld [vmem:[%s1 + $0x148] sm:$0xf]
      %v351 = vld [vmem:[%s1 + $0x14c] sm:$0xf]
      %v352 = vld [vmem:[%s1 + $0x150] sm:$0xf]
      %v353 = vld [vmem:[%s1 + $0x154] sm:$0xf]
      %v354 = vld [vmem:[%s1 + $0x158] sm:$0xf]
      %v355 = vld [vmem:[%s1 + $0x15c] sm:$0xf]
      %v356 = vld [vmem:[%s1 + $0x160] sm:$0xf]
      %v357 = vld [vmem:[%s1 + $0x164] sm:$0xf]
      %v358 = vld [vmem:[%s1 + $0x168] sm:$0xf]
      %v359 = vld [vmem:[%s1 + $0x16c] sm:$0xf]
      %v360 = vld [vmem:[%s1 + $0x170] sm:$0xf]
      %v361 = vld [vmem:[%s1 + $0x174] sm:$0xf]
      %v362 = vld [vmem:[%s1 + $0x178] sm:$0xf]
      %v363 = vld [vmem:[%s1 + $0x17c] sm:$0xf]
      %v364 = vld [vmem:[%s2] sm:$0xf]
      %v365 = vld [vmem:[%s2 + $0x4] sm:$0xf]
      %v366 = vld [vmem:[%s2 + $0x8] sm:$0xf]
      %v367 = vld [vmem:[%s2 + $0xc] sm:$0xf]
      %v368 = vld [vmem:[%s2 + $0x10] sm:$0xf]
      %v369 = vld [vmem:[%s2 + $0x14] sm:$0xf]
      %v370 = vld [vmem:[%s2 + $0x18] sm:$0xf]
      %v371 = vld [vmem:[%s2 + $0x1c] sm:$0xf]
      %v372 = vld [vmem:[%s2 + $0x20] sm:$0xf]
      %v373 = vld [vmem:[%s2 + $0x24] sm:$0xf]
      %v374 = vld [vmem:[%s2 + $0x28] sm:$0xf]
      %v375 = vld [vmem:[%s2 + $0x2c] sm:$0xf]
      %v376 = vld [vmem:[%s2 + $0x30] sm:$0xf]
      %v377 = vld [vmem:[%s2 + $0x34] sm:$0xf]
      %v378 = vld [vmem:[%s2 + $0x38] sm:$0xf]
      %v379 = vld [vmem:[%s2 + $0x3c] sm:$0xf]
      %v380 = vld [vmem:[%s2 + $0x40] sm:$0xf]
      %v381 = vld [vmem:[%s2 + $0x44] sm:$0xf]
      %v382 = vld [vmem:[%s2 + $0x48] sm:$0xf]
      %v383 = vld [vmem:[%s2 + $0x4c] sm:$0xf]
      %v384 = vld [vmem:[%s2 + $0x50] sm:$0xf]
      %v385 = vld [vmem:[%s2 + $0x54] sm:$0xf]
      %v386 = vld [vmem:[%s2 + $0x58] sm:$0xf]
      %v387 = vld [vmem:[%s2 + $0x5c] sm:$0xf]
      %v388 = vld [vmem:[%s2 + $0x60] sm:$0xf]
      %v389 = vld [vmem:[%s2 + $0x64] sm:$0xf]
      %v390 = vld [vmem:[%s2 + $0x68] sm:$0xf]
      %v391 = vld [vmem:[%s2 + $0x6c] sm:$0xf]
      %v392 = vld [vmem:[%s2 + $0x70] sm:$0xf]
      %v393 = vld [vmem:[%s2 + $0x74] sm:$0xf]
      %v394 = vld [vmem:[%s2 + $0x78] sm:$0xf]
      %v395 = vld [vmem:[%s2 + $0x7c] sm:$0xf]
      %v396 = vld [vmem:[%s2 + $0x80] sm:$0xf]
      %v397 = vld [vmem:[%s2 + $0x84] sm:$0xf]
      %v398 = vld [vmem:[%s2 + $0x88] sm:$0xf]
      %v399 = vld [vmem:[%s2 + $0x8c] sm:$0xf]
      %v400 = vld [vmem:[%s2 + $0x90] sm:$0xf]
      %v401 = vld [vmem:[%s2 + $0x94] sm:$0xf]
      %v402 = vld [vmem:[%s2 + $0x98] sm:$0xf]
      %v403 = vld [vmem:[%s2 + $0x9c] sm:$0xf]
      %v404 = vld [vmem:[%s2 + $0xa0] sm:$0xf]
      %v405 = vld [vmem:[%s2 + $0xa4] sm:$0xf]
      %v406 = vld [vmem:[%s2 + $0xa8] sm:$0xf]
      %v407 = vld [vmem:[%s2 + $0xac] sm:$0xf]
      %v408 = vld [vmem:[%s2 + $0xb0] sm:$0xf]
      %v409 = vld [vmem:[%s2 + $0xb4] sm:$0xf]
      %v410 = vld [vmem:[%s2 + $0xb8] sm:$0xf]
      %v411 = vld [vmem:[%s2 + $0xbc] sm:$0xf]
      %v430 = vunpack.c.l.b16 %v241
      %v431 = vunpack.c.h.b16 %v241
      %v432 = vunpack.c.l.b16 %v242
      %v433 = vunpack.c.l.b16 %v244
      %v434 = vunpack.c.h.b16 %v244
      %v435 = vunpack.c.l.b16 %v245
      %v436 = vunpack.c.l.b16 %v247
      %v437 = vunpack.c.h.b16 %v247
      %v438 = vunpack.c.l.b16 %v248
      %v439 = vunpack.c.l.b16 %v250
      %v440 = vunpack.c.h.b16 %v250
      %v441 = vunpack.c.l.b16 %v251
      %v442 = vunpack.c.l.b16 %v253
      %v443 = vunpack.c.h.b16 %v253
      %v444 = vunpack.c.l.b16 %v254
      %v445 = vunpack.c.l.b16 %v256
      %v446 = vunpack.c.h.b16 %v256
      %v447 = vunpack.c.l.b16 %v257
      %v448 = vunpack.c.l.b16 %v259
      %v449 = vunpack.c.h.b16 %v259
      %v450 = vunpack.c.l.b16 %v260
      %v451 = vunpack.c.l.b16 %v262
      %v452 = vunpack.c.h.b16 %v262
      %v453 = vunpack.c.l.b16 %v263
      %v454 = vunpack.c.l.b16 %v265
      %v455 = vunpack.c.h.b16 %v265
      %v456 = vunpack.c.l.b16 %v266
      %v457 = vpack.c.b16 %v433, %v430
      %v458 = vpack.c.b16 %v434, %v431
      %v459 = vpack.c.b16 %v435, %v432
      %v460 = vpack.c.b16 %v439, %v436
      %v461 = vpack.c.b16 %v440, %v437
      %v462 = vpack.c.b16 %v441, %v438
      %v463 = vpack.c.b16 %v445, %v442
      %v464 = vpack.c.b16 %v446, %v443
      %v465 = vpack.c.b16 %v447, %v444
      %v466 = vpack.c.b16 %v451, %v448
      %v467 = vpack.c.b16 %v452, %v449
      %v468 = vpack.c.b16 %v453, %v450
      %v469 = vpack.c.b16 %v454, %v454
      %v470 = vpack.c.b16 %v455, %v455
      %v471 = vpack.c.b16 %v456, %v456
      %v535 = vunpack.c.l.b16 %v364
      %v536 = vunpack.c.l.b16 %v365
      %v537 = vunpack.c.l.b16 %v366
      %v538 = vunpack.c.l.b16 %v367
      %v539 = vunpack.c.l.b16 %v368
      %v540 = vunpack.c.l.b16 %v369
      %v541 = vunpack.c.l.b16 %v370
      %v542 = vunpack.c.l.b16 %v371
      %v543 = vunpack.c.l.b16 %v372
      %v544 = vunpack.c.l.b16 %v373
      %v545 = vunpack.c.l.b16 %v374
      %v546 = vunpack.c.l.b16 %v375
      %v547 = vunpack.c.l.b16 %v376
      %v548 = vunpack.c.l.b16 %v377
      %v549 = vunpack.c.l.b16 %v378
      %v550 = vunpack.c.l.b16 %v379
      %v551 = vunpack.c.l.b16 %v380
      %v552 = vunpack.c.l.b16 %v381
      %v553 = vunpack.c.l.b16 %v382
      %v554 = vunpack.c.l.b16 %v383
      %v555 = vunpack.c.l.b16 %v384
      %v556 = vunpack.c.l.b16 %v385
      %v557 = vunpack.c.l.b16 %v386
      %v558 = vunpack.c.l.b16 %v387
      %v559 = vunpack.c.l.b16 %v388
      %v560 = vunpack.c.l.b16 %v389
      %v561 = vunpack.c.l.b16 %v390
      %v562 = vunpack.c.l.b16 %v391
      %v563 = vunpack.c.l.b16 %v392
      %v564 = vunpack.c.l.b16 %v393
      %v565 = vunpack.c.l.b16 %v394
      %v566 = vunpack.c.l.b16 %v395
      %v567 = vunpack.c.l.b16 %v396
      %v568 = vunpack.c.l.b16 %v397
      %v569 = vunpack.c.l.b16 %v398
      %v570 = vunpack.c.l.b16 %v399
      %v571 = vunpack.c.l.b16 %v400
      %v572 = vunpack.c.l.b16 %v401
      %v573 = vunpack.c.l.b16 %v402
      %v574 = vunpack.c.l.b16 %v403
      %v575 = vunpack.c.l.b16 %v404
      %v576 = vunpack.c.l.b16 %v405
      %v577 = vunpack.c.l.b16 %v406
      %v578 = vunpack.c.l.b16 %v407
      %v579 = vunpack.c.l.b16 %v408
      %v580 = vunpack.c.l.b16 %v409
      %v581 = vunpack.c.l.b16 %v410
      %v582 = vunpack.c.l.b16 %v411
      %v583 = vpack.c.b16 %v536, %v535
      %v584 = vpack.c.b16 %v538, %v537
      %v585 = vpack.c.b16 %v540, %v539
      %v586 = vpack.c.b16 %v542, %v541
      %v587 = vpack.c.b16 %v544, %v543
      %v588 = vpack.c.b16 %v546, %v545
      %v589 = vpack.c.b16 %v548, %v547
      %v590 = vpack.c.b16 %v550, %v549
      %v591 = vpack.c.b16 %v552, %v551
      %v592 = vpack.c.b16 %v554, %v553
      %v593 = vpack.c.b16 %v556, %v555
      %v594 = vpack.c.b16 %v558, %v557
      %v595 = vpack.c.b16 %v560, %v559
      %v596 = vpack.c.b16 %v562, %v561
      %v597 = vpack.c.b16 %v564, %v563
      %v598 = vpack.c.b16 %v566, %v565
      %v599 = vpack.c.b16 %v568, %v567
      %v600 = vpack.c.b16 %v570, %v569
      %v601 = vpack.c.b16 %v572, %v571
      %v602 = vpack.c.b16 %v574, %v573
      %v603 = vpack.c.b16 %v576, %v575
      %v604 = vpack.c.b16 %v578, %v577
      %v605 = vpack.c.b16 %v580, %v579
      %v606 = vpack.c.b16 %v582, %v581
      %631 = vmatprep.subr.bf16.mxu0 0
      %632 = vmatpush1.bf16.msra.mxu0 %v590
      %633 = vmatprep.subr.bf16.mxu0 0
      %634 = vmatpush1.bf16.msra.mxu0 %v589
      %635 = vmatprep.subr.bf16.mxu0 0
      %636 = vmatpush1.bf16.msra.mxu0 %v588
      %637 = vmatprep.subr.bf16.mxu0 0
      %638 = vmatpush1.bf16.msra.mxu0 %v587
      %639 = vmatprep.subr.bf16.mxu0 0
      %640 = vmatpush1.bf16.msra.mxu0 %v586
      %641 = vmatprep.subr.bf16.mxu0 0
      %642 = vmatpush1.bf16.msra.mxu0 %v585
      %643 = vmatprep.subr.bf16.mxu0 0
      %644 = vmatpush1.bf16.msra.mxu0 %v584
      %645 = vmatprep.subr.bf16.mxu0 0
      %646 = vmatpush1.bf16.msra.mxu0 %v583
      %647 = vmatprep.subr.bf16.mxu0 0
      %648 = vmatpush2.bf16.msra.mxu0 %v598
      %649 = vmatprep.subr.bf16.mxu0 0
      %650 = vmatpush2.bf16.msra.mxu0 %v597
      %651 = vmatprep.subr.bf16.mxu0 0
      %652 = vmatpush2.bf16.msra.mxu0 %v596
      %653 = vmatprep.subr.bf16.mxu0 0
      %654 = vmatpush2.bf16.msra.mxu0 %v595
      %655 = vmatprep.subr.bf16.mxu0 0
      %656 = vmatpush2.bf16.msra.mxu0 %v594
      %657 = vmatprep.subr.bf16.mxu0 0
      %658 = vmatpush2.bf16.msra.mxu0 %v593
      %659 = vmatprep.subr.bf16.mxu0 0
      %660 = vmatpush2.bf16.msra.mxu0 %v592
      %661 = vmatprep.subr.bf16.mxu0 0
      %662 = vmatpush2.bf16.msra.mxu0 %v591
      %663 = vmatprep.mubr.bf16.mxu0 %v458
      %664 = vmatmul.mubr.bf16.gmra.mxu0 %v457
      %v665 = vpop.f32.mrf.mxu0
      %v666 = vadd.f32 0.0, %v665
      %v667 = vpop.f32.mrf.mxu0
      %v668 = vpop.f32.mrf.mxu0
      %v669 = vadd.f32 0.0, %v668
      %v670 = vpop.f32.mrf.mxu0
      %671 = vmatprep.mubr.bf16.mxu0 %v461
      %672 = vmatmul.mubr.bf16.gmra.mxu0 %v460
      %v673 = vpop.f32.mrf.mxu0
      %v674 = vadd.f32 0.0, %v673
      %v675 = vpop.f32.mrf.mxu0
      %v676 = vpop.f32.mrf.mxu0
      %v677 = vadd.f32 0.0, %v676
      %v678 = vpop.f32.mrf.mxu0
      %679 = vmatprep.mubr.bf16.mxu0 %v464
      %680 = vmatmul.mubr.bf16.gmra.mxu0 %v463
      %v681 = vpop.f32.mrf.mxu0
      %v682 = vadd.f32 0.0, %v681
      %v683 = vpop.f32.mrf.mxu0
      %v684 = vpop.f32.mrf.mxu0
      %v685 = vadd.f32 0.0, %v684
      %v686 = vpop.f32.mrf.mxu0
      %687 = vmatprep.mubr.bf16.mxu0 %v467
      %688 = vmatmul.mubr.bf16.gmra.mxu0 %v466
      %v689 = vpop.f32.mrf.mxu0
      %v690 = vadd.f32 0.0, %v689
      %v691 = vpop.f32.mrf.mxu0
      %v692 = vpop.f32.mrf.mxu0
      %v693 = vadd.f32 0.0, %v692
      %v694 = vpop.f32.mrf.mxu0
      %695 = vmatprep.mubr.bf16.mxu0 %v470
      %696 = vmatmul.mubr.bf16.gmra.mxu0 %v469
      %v697 = vpop.f32.mrf.mxu0
      %v698 = vadd.f32 0.0, %v697
      %v699 = vpop.f32.mrf.mxu0
      %v700 = vpop.f32.mrf.mxu0
      %v701 = vpop.f32.mrf.mxu0
      %702 = vdwg.mxu0
      %703 = vmatprep.subr.bf16.mxu0 0
      %704 = vmatpush1.bf16.msra.mxu0 %v606
      %705 = vmatprep.subr.bf16.mxu0 0
      %706 = vmatpush1.bf16.msra.mxu0 %v605
      %707 = vmatprep.subr.bf16.mxu0 0
      %708 = vmatpush1.bf16.msra.mxu0 %v604
      %709 = vmatprep.subr.bf16.mxu0 0
      %710 = vmatpush1.bf16.msra.mxu0 %v603
      %711 = vmatprep.subr.bf16.mxu0 0
      %712 = vmatpush1.bf16.msra.mxu0 %v602
      %713 = vmatprep.subr.bf16.mxu0 0
      %714 = vmatpush1.bf16.msra.mxu0 %v601
      %715 = vmatprep.subr.bf16.mxu0 0
      %716 = vmatpush1.bf16.msra.mxu0 %v600
      %717 = vmatprep.subr.bf16.mxu0 0
      %718 = vmatpush1.bf16.msra.mxu0 %v599
      %719 = vmatprep.subr.bf16.mxu0 0
      %720 = vmatpush2.bf16.msra.mxu0 0
      %721 = vmatprep.subr.bf16.mxu0 0
      %722 = vmatpush2.bf16.msra.mxu0 0
      %723 = vmatprep.subr.bf16.mxu0 0
      %724 = vmatpush2.bf16.msra.mxu0 0
      %725 = vmatprep.subr.bf16.mxu0 0
      %726 = vmatpush2.bf16.msra.mxu0 0
      %727 = vmatprep.subr.bf16.mxu0 0
      %728 = vmatpush2.bf16.msra.mxu0 0
      %729 = vmatprep.subr.bf16.mxu0 0
      %730 = vmatpush2.bf16.msra.mxu0 0
      %731 = vmatprep.subr.bf16.mxu0 0
      %732 = vmatpush2.bf16.msra.mxu0 0
      %733 = vmatprep.subr.bf16.mxu0 0
      %734 = vmatpush2.bf16.msra.mxu0 0
      %735 = vmatprep.mubr.bf16.mxu0 0
      %736 = vmatmul.mubr.bf16.gmra.mxu0 %v459
      %v737 = vpop.f32.mrf.mxu0
      %v738 = vadd.f32 %v666, %v737
      %v739 = vpop.f32.mrf.mxu0
      %v740 = vpop.f32.mrf.mxu0
      %v741 = vadd.f32 %v669, %v740
      %v742 = vpop.f32.mrf.mxu0
      %743 = vmatprep.mubr.bf16.mxu0 0
      %744 = vmatmul.mubr.bf16.gmra.mxu0 %v462
      %v745 = vpop.f32.mrf.mxu0
      %v746 = vadd.f32 %v674, %v745
      %v747 = vpop.f32.mrf.mxu0
      %v748 = vpop.f32.mrf.mxu0
      %v749 = vadd.f32 %v677, %v748
      %v750 = vpop.f32.mrf.mxu0
      %751 = vmatprep.mubr.bf16.mxu0 0
      %752 = vmatmul.mubr.bf16.gmra.mxu0 %v465
      %v753 = vpop.f32.mrf.mxu0
      %v754 = vadd.f32 %v682, %v753
      %v755 = vpop.f32.mrf.mxu0
      %v756 = vpop.f32.mrf.mxu0
      %v757 = vadd.f32 %v685, %v756
      %v758 = vpop.f32.mrf.mxu0
      %759 = vmatprep.mubr.bf16.mxu0 0
      %760 = vmatmul.mubr.bf16.gmra.mxu0 %v468
      %v761 = vpop.f32.mrf.mxu0
      %v762 = vadd.f32 %v690, %v761
      %v763 = vpop.f32.mrf.mxu0
      %v764 = vpop.f32.mrf.mxu0
      %v765 = vadd.f32 %v693, %v764
      %v766 = vpop.f32.mrf.mxu0
      %767 = vmatprep.mubr.bf16.mxu0 0
      %768 = vmatmul.mubr.bf16.gmra.mxu0 %v471
      %v769 = vpop.f32.mrf.mxu0
      %v770 = vadd.f32 %v698, %v769
      %v771 = vpop.f32.mrf.mxu0
      %v772 = vpop.f32.mrf.mxu0
      %v773 = vpop.f32.mrf.mxu0
      %774 = vdwg.mxu0
      %v775 = vrot.slane %v738, 1
      %v776 = vrot.slane %v741, 1
      %v777 = vrot.slane %v746, 1
      %v778 = vrot.slane %v749, 1
      %v779 = vrot.slane %v754, 1
      %v780 = vrot.slane %v757, 1
      %v781 = vrot.slane %v762, 1
      %v782 = vrot.slane %v765, 1
      %v783 = vrot.slane %v770, 1
      %v784 = vlaneseq
      %v785 = vshrl.u32 %v784, 7
      %vm786 = vcmp.lt.s32.totalorder %v785, 7
      %v787 = vsel %vm786, %v782, %v783
      %v788 = vsel %vm786, %v781, %v782
      %v789 = vsel %vm786, %v780, %v781
      %v790 = vsel %vm786, %v779, %v780
      %v791 = vsel %vm786, %v778, %v779
      %v792 = vsel %vm786, %v777, %v778
      %v793 = vsel %vm786, %v776, %v777
      %v794 = vsel %vm786, %v775, %v776
      %v795 = vsel %vm786, %v783, %v775
      %v805 = vunpack.c.h.b16 %v242
      %v806 = vunpack.c.l.b16 %v243
      %v807 = vunpack.c.h.b16 %v243
      %v808 = vunpack.c.h.b16 %v245
      %v809 = vunpack.c.l.b16 %v246
      %v810 = vunpack.c.h.b16 %v246
      %v811 = vunpack.c.h.b16 %v248
      %v812 = vunpack.c.l.b16 %v249
      %v813 = vunpack.c.h.b16 %v249
      %v814 = vunpack.c.h.b16 %v251
      %v815 = vunpack.c.l.b16 %v252
      %v816 = vunpack.c.h.b16 %v252
      %v817 = vunpack.c.h.b16 %v254
      %v818 = vunpack.c.l.b16 %v255
      %v819 = vunpack.c.h.b16 %v255
      %v820 = vunpack.c.h.b16 %v257
      %v821 = vunpack.c.l.b16 %v258
      %v822 = vunpack.c.h.b16 %v258
      %v823 = vunpack.c.h.b16 %v260
      %v824 = vunpack.c.l.b16 %v261
      %v825 = vunpack.c.h.b16 %v261
      %v826 = vunpack.c.h.b16 %v263
      %v827 = vunpack.c.l.b16 %v264
      %v828 = vunpack.c.h.b16 %v264
      %v829 = vunpack.c.h.b16 %v266
      %v830 = vunpack.c.l.b16 %v267
      %v831 = vunpack.c.h.b16 %v267
      %v832 = vpack.c.b16 %v808, %v805
      %v833 = vpack.c.b16 %v809, %v806
      %v834 = vpack.c.b16 %v810, %v807
      %v835 = vpack.c.b16 %v814, %v811
      %v836 = vpack.c.b16 %v815, %v812
      %v837 = vpack.c.b16 %v816, %v813
      %v838 = vpack.c.b16 %v820, %v817
      %v839 = vpack.c.b16 %v821, %v818
      %v840 = vpack.c.b16 %v822, %v819
      %v841 = vpack.c.b16 %v826, %v823
      %v842 = vpack.c.b16 %v827, %v824
      %v843 = vpack.c.b16 %v828, %v825
      %v844 = vpack.c.b16 %v829, %v829
      %v845 = vpack.c.b16 %v830, %v830
      %v846 = vpack.c.b16 %v831, %v831
      %v958 = vunpack.c.l.b16 %v268
      %v959 = vunpack.c.l.b16 %v269
      %v960 = vunpack.c.l.b16 %v270
      %v961 = vunpack.c.l.b16 %v271
      %v962 = vunpack.c.l.b16 %v272
      %v963 = vunpack.c.l.b16 %v273
      %v964 = vunpack.c.l.b16 %v274
      %v965 = vunpack.c.l.b16 %v275
      %v966 = vunpack.c.l.b16 %v276
      %v967 = vunpack.c.l.b16 %v277
      %v968 = vunpack.c.l.b16 %v278
      %v969 = vunpack.c.l.b16 %v279
      %v970 = vunpack.c.l.b16 %v280
      %v971 = vunpack.c.l.b16 %v281
      %v972 = vunpack.c.l.b16 %v282
      %v973 = vunpack.c.l.b16 %v283
      %v974 = vunpack.c.l.b16 %v284
      %v975 = vunpack.c.l.b16 %v285
      %v976 = vunpack.c.l.b16 %v286
      %v977 = vunpack.c.l.b16 %v287
      %v978 = vunpack.c.l.b16 %v288
      %v979 = vunpack.c.l.b16 %v289
      %v980 = vunpack.c.l.b16 %v290
      %v981 = vunpack.c.l.b16 %v291
      %v982 = vunpack.c.l.b16 %v292
      %v983 = vunpack.c.l.b16 %v293
      %v984 = vunpack.c.l.b16 %v294
      %v985 = vunpack.c.l.b16 %v295
      %v986 = vunpack.c.l.b16 %v296
      %v987 = vunpack.c.l.b16 %v297
      %v988 = vunpack.c.l.b16 %v298
      %v989 = vunpack.c.l.b16 %v299
      %v990 = vunpack.c.l.b16 %v300
      %v991 = vunpack.c.l.b16 %v301
      %v992 = vunpack.c.l.b16 %v302
      %v993 = vunpack.c.l.b16 %v303
      %v994 = vunpack.c.l.b16 %v304
      %v995 = vunpack.c.l.b16 %v305
      %v996 = vunpack.c.l.b16 %v306
      %v997 = vunpack.c.l.b16 %v307
      %v998 = vunpack.c.l.b16 %v308
      %v999 = vunpack.c.l.b16 %v309
      %v1000 = vunpack.c.l.b16 %v310
      %v1001 = vunpack.c.l.b16 %v311
      %v1002 = vunpack.c.l.b16 %v312
      %v1003 = vunpack.c.l.b16 %v313
      %v1004 = vunpack.c.l.b16 %v314
      %v1005 = vunpack.c.l.b16 %v315
      %v1006 = vunpack.c.l.b16 %v316
      %v1007 = vunpack.c.l.b16 %v317
      %v1008 = vunpack.c.l.b16 %v318
      %v1009 = vunpack.c.l.b16 %v319
      %v1010 = vunpack.c.l.b16 %v320
      %v1011 = vunpack.c.l.b16 %v321
      %v1012 = vunpack.c.l.b16 %v322
      %v1013 = vunpack.c.l.b16 %v323
      %v1014 = vunpack.c.l.b16 %v324
      %v1015 = vunpack.c.l.b16 %v325
      %v1016 = vunpack.c.l.b16 %v326
      %v1017 = vunpack.c.l.b16 %v327
      %v1018 = vunpack.c.l.b16 %v328
      %v1019 = vunpack.c.l.b16 %v329
      %v1020 = vunpack.c.l.b16 %v330
      %v1021 = vunpack.c.l.b16 %v331
      %v1022 = vunpack.c.l.b16 %v332
      %v1023 = vunpack.c.l.b16 %v333
      %v1024 = vunpack.c.l.b16 %v334
      %v1025 = vunpack.c.l.b16 %v335
      %v1026 = vunpack.c.l.b16 %v336
      %v1027 = vunpack.c.l.b16 %v337
      %v1028 = vunpack.c.l.b16 %v338
      %v1029 = vunpack.c.l.b16 %v339
      %v1030 = vunpack.c.l.b16 %v340
      %v1031 = vunpack.c.l.b16 %v341
      %v1032 = vunpack.c.l.b16 %v342
      %v1033 = vunpack.c.l.b16 %v343
      %v1034 = vunpack.c.l.b16 %v344
      %v1035 = vunpack.c.l.b16 %v345
      %v1036 = vunpack.c.l.b16 %v346
      %v1037 = vunpack.c.l.b16 %v347
      %v1038 = vunpack.c.l.b16 %v348
      %v1039 = vunpack.c.l.b16 %v349
      %v1040 = vunpack.c.l.b16 %v350
      %v1041 = vunpack.c.l.b16 %v351
      %v1042 = vunpack.c.l.b16 %v352
      %v1043 = vunpack.c.l.b16 %v353
      %v1044 = vunpack.c.l.b16 %v354
      %v1045 = vunpack.c.l.b16 %v355
      %v1046 = vunpack.c.l.b16 %v356
      %v1047 = vunpack.c.l.b16 %v357
      %v1048 = vunpack.c.l.b16 %v358
      %v1049 = vunpack.c.l.b16 %v359
      %v1050 = vunpack.c.l.b16 %v360
      %v1051 = vunpack.c.l.b16 %v361
      %v1052 = vunpack.c.l.b16 %v362
      %v1053 = vunpack.c.l.b16 %v363
      %v1054 = vpack.c.b16 %v959, %v958
      %v1055 = vpack.c.b16 %v961, %v960
      %v1056 = vpack.c.b16 %v963, %v962
      %v1057 = vpack.c.b16 %v965, %v964
      %v1058 = vpack.c.b16 %v967, %v966
      %v1059 = vpack.c.b16 %v969, %v968
      %v1060 = vpack.c.b16 %v971, %v970
      %v1061 = vpack.c.b16 %v973, %v972
      %v1062 = vpack.c.b16 %v975, %v974
      %v1063 = vpack.c.b16 %v977, %v976
      %v1064 = vpack.c.b16 %v979, %v978
      %v1065 = vpack.c.b16 %v981, %v980
      %v1066 = vpack.c.b16 %v983, %v982
      %v1067 = vpack.c.b16 %v985, %v984
      %v1068 = vpack.c.b16 %v987, %v986
      %v1069 = vpack.c.b16 %v989, %v988
      %v1070 = vpack.c.b16 %v991, %v990
      %v1071 = vpack.c.b16 %v993, %v992
      %v1072 = vpack.c.b16 %v995, %v994
      %v1073 = vpack.c.b16 %v997, %v996
      %v1074 = vpack.c.b16 %v999, %v998
      %v1075 = vpack.c.b16 %v1001, %v1000
      %v1076 = vpack.c.b16 %v1003, %v1002
      %v1077 = vpack.c.b16 %v1005, %v1004
      %v1078 = vpack.c.b16 %v1007, %v1006
      %v1079 = vpack.c.b16 %v1009, %v1008
      %v1080 = vpack.c.b16 %v1011, %v1010
      %v1081 = vpack.c.b16 %v1013, %v1012
      %v1082 = vpack.c.b16 %v1015, %v1014
      %v1083 = vpack.c.b16 %v1017, %v1016
      %v1084 = vpack.c.b16 %v1019, %v1018
      %v1085 = vpack.c.b16 %v1021, %v1020
      %v1086 = vpack.c.b16 %v1023, %v1022
      %v1087 = vpack.c.b16 %v1025, %v1024
      %v1088 = vpack.c.b16 %v1027, %v1026
      %v1089 = vpack.c.b16 %v1029, %v1028
      %v1090 = vpack.c.b16 %v1031, %v1030
      %v1091 = vpack.c.b16 %v1033, %v1032
      %v1092 = vpack.c.b16 %v1035, %v1034
      %v1093 = vpack.c.b16 %v1037, %v1036
      %v1094 = vpack.c.b16 %v1039, %v1038
      %v1095 = vpack.c.b16 %v1041, %v1040
      %v1096 = vpack.c.b16 %v1043, %v1042
      %v1097 = vpack.c.b16 %v1045, %v1044
      %v1098 = vpack.c.b16 %v1047, %v1046
      %v1099 = vpack.c.b16 %v1049, %v1048
      %v1100 = vpack.c.b16 %v1051, %v1050
      %v1101 = vpack.c.b16 %v1053, %v1052
      %1150 = vmatprep.subr.bf16.mxu0 0
      %1151 = vmatpush1.bf16.msra.mxu0 %v1061
      %1152 = vmatprep.subr.bf16.mxu0 0
      %1153 = vmatpush1.bf16.msra.mxu0 %v1060
      %1154 = vmatprep.subr.bf16.mxu0 0
      %1155 = vmatpush1.bf16.msra.mxu0 %v1059
      %1156 = vmatprep.subr.bf16.mxu0 0
      %1157 = vmatpush1.bf16.msra.mxu0 %v1058
      %1158 = vmatprep.subr.bf16.mxu0 0
      %1159 = vmatpush1.bf16.msra.mxu0 %v1057
      %1160 = vmatprep.subr.bf16.mxu0 0
      %1161 = vmatpush1.bf16.msra.mxu0 %v1056
      %1162 = vmatprep.subr.bf16.mxu0 0
      %1163 = vmatpush1.bf16.msra.mxu0 %v1055
      %1164 = vmatprep.subr.bf16.mxu0 0
      %1165 = vmatpush1.bf16.msra.mxu0 %v1054
      %1166 = vmatprep.subr.bf16.mxu0 0
      %1167 = vmatpush2.bf16.msra.mxu0 %v1069
      %1168 = vmatprep.subr.bf16.mxu0 0
      %1169 = vmatpush2.bf16.msra.mxu0 %v1068
      %1170 = vmatprep.subr.bf16.mxu0 0
      %1171 = vmatpush2.bf16.msra.mxu0 %v1067
      %1172 = vmatprep.subr.bf16.mxu0 0
      %1173 = vmatpush2.bf16.msra.mxu0 %v1066
      %1174 = vmatprep.subr.bf16.mxu0 0
      %1175 = vmatpush2.bf16.msra.mxu0 %v1065
      %1176 = vmatprep.subr.bf16.mxu0 0
      %1177 = vmatpush2.bf16.msra.mxu0 %v1064
      %1178 = vmatprep.subr.bf16.mxu0 0
      %1179 = vmatpush2.bf16.msra.mxu0 %v1063
      %1180 = vmatprep.subr.bf16.mxu0 0
      %1181 = vmatpush2.bf16.msra.mxu0 %v1062
      %1182 = vmatprep.mubr.bf16.mxu0 %v458
      %1183 = vmatmul.mubr.bf16.gmra.mxu0 %v457
      %v1184 = vpop.f32.mrf.mxu0
      %v1185 = vadd.f32 %v794, %v1184
      %v1186 = vpop.f32.mrf.mxu0
      %v1187 = vpop.f32.mrf.mxu0
      %v1188 = vadd.f32 %v793, %v1187
      %v1189 = vpop.f32.mrf.mxu0
      %1190 = vmatprep.mubr.bf16.mxu0 %v461
      %1191 = vmatmul.mubr.bf16.gmra.mxu0 %v460
      %v1192 = vpop.f32.mrf.mxu0
      %v1193 = vadd.f32 %v792, %v1192
      %v1194 = vpop.f32.mrf.mxu0
      %v1195 = vpop.f32.mrf.mxu0
      %v1196 = vadd.f32 %v791, %v1195
      %v1197 = vpop.f32.mrf.mxu0
      %1198 = vmatprep.mubr.bf16.mxu0 %v464
      %1199 = vmatmul.mubr.bf16.gmra.mxu0 %v463
      %v1200 = vpop.f32.mrf.mxu0
      %v1201 = vadd.f32 %v790, %v1200
      %v1202 = vpop.f32.mrf.mxu0
      %v1203 = vpop.f32.mrf.mxu0
      %v1204 = vadd.f32 %v789, %v1203
      %v1205 = vpop.f32.mrf.mxu0
      %1206 = vmatprep.mubr.bf16.mxu0 %v467
      %1207 = vmatmul.mubr.bf16.gmra.mxu0 %v466
      %v1208 = vpop.f32.mrf.mxu0
      %v1209 = vadd.f32 %v788, %v1208
      %v1210 = vpop.f32.mrf.mxu0
      %v1211 = vpop.f32.mrf.mxu0
      %v1212 = vadd.f32 %v787, %v1211
      %v1213 = vpop.f32.mrf.mxu0
      %1214 = vmatprep.mubr.bf16.mxu0 %v470
      %1215 = vmatmul.mubr.bf16.gmra.mxu0 %v469
      %v1216 = vpop.f32.mrf.mxu0
      %v1217 = vadd.f32 %v795, %v1216
      %v1218 = vpop.f32.mrf.mxu0
      %v1219 = vpop.f32.mrf.mxu0
      %v1220 = vpop.f32.mrf.mxu0
      %1221 = vdwg.mxu0
      %1222 = vmatprep.subr.bf16.mxu0 0
      %1223 = vmatpush1.bf16.msra.mxu0 %v1077
      %1224 = vmatprep.subr.bf16.mxu0 0
      %1225 = vmatpush1.bf16.msra.mxu0 %v1076
      %1226 = vmatprep.subr.bf16.mxu0 0
      %1227 = vmatpush1.bf16.msra.mxu0 %v1075
      %1228 = vmatprep.subr.bf16.mxu0 0
      %1229 = vmatpush1.bf16.msra.mxu0 %v1074
      %1230 = vmatprep.subr.bf16.mxu0 0
      %1231 = vmatpush1.bf16.msra.mxu0 %v1073
      %1232 = vmatprep.subr.bf16.mxu0 0
      %1233 = vmatpush1.bf16.msra.mxu0 %v1072
      %1234 = vmatprep.subr.bf16.mxu0 0
      %1235 = vmatpush1.bf16.msra.mxu0 %v1071
      %1236 = vmatprep.subr.bf16.mxu0 0
      %1237 = vmatpush1.bf16.msra.mxu0 %v1070
      %1238 = vmatprep.subr.bf16.mxu0 0
      %1239 = vmatpush2.bf16.msra.mxu0 %v1085
      %1240 = vmatprep.subr.bf16.mxu0 0
      %1241 = vmatpush2.bf16.msra.mxu0 %v1084
      %1242 = vmatprep.subr.bf16.mxu0 0
      %1243 = vmatpush2.bf16.msra.mxu0 %v1083
      %1244 = vmatprep.subr.bf16.mxu0 0
      %1245 = vmatpush2.bf16.msra.mxu0 %v1082
      %1246 = vmatprep.subr.bf16.mxu0 0
      %1247 = vmatpush2.bf16.msra.mxu0 %v1081
      %1248 = vmatprep.subr.bf16.mxu0 0
      %1249 = vmatpush2.bf16.msra.mxu0 %v1080
      %1250 = vmatprep.subr.bf16.mxu0 0
      %1251 = vmatpush2.bf16.msra.mxu0 %v1079
      %1252 = vmatprep.subr.bf16.mxu0 0
      %1253 = vmatpush2.bf16.msra.mxu0 %v1078
      %1254 = vmatprep.mubr.bf16.mxu0 %v832
      %1255 = vmatmul.mubr.bf16.gmra.mxu0 %v459
      %v1256 = vpop.f32.mrf.mxu0
      %v1257 = vadd.f32 %v1185, %v1256
      %v1258 = vpop.f32.mrf.mxu0
      %v1259 = vpop.f32.mrf.mxu0
      %v1260 = vadd.f32 %v1188, %v1259
      %v1261 = vpop.f32.mrf.mxu0
      %1262 = vmatprep.mubr.bf16.mxu0 %v835
      %1263 = vmatmul.mubr.bf16.gmra.mxu0 %v462
      %v1264 = vpop.f32.mrf.mxu0
      %v1265 = vadd.f32 %v1193, %v1264
      %v1266 = vpop.f32.mrf.mxu0
      %v1267 = vpop.f32.mrf.mxu0
      %v1268 = vadd.f32 %v1196, %v1267
      %v1269 = vpop.f32.mrf.mxu0
      %1270 = vmatprep.mubr.bf16.mxu0 %v838
      %1271 = vmatmul.mubr.bf16.gmra.mxu0 %v465
      %v1272 = vpop.f32.mrf.mxu0
      %v1273 = vadd.f32 %v1201, %v1272
      %v1274 = vpop.f32.mrf.mxu0
      %v1275 = vpop.f32.mrf.mxu0
      %v1276 = vadd.f32 %v1204, %v1275
      %v1277 = vpop.f32.mrf.mxu0
      %1278 = vmatprep.mubr.bf16.mxu0 %v841
      %1279 = vmatmul.mubr.bf16.gmra.mxu0 %v468
      %v1280 = vpop.f32.mrf.mxu0
      %v1281 = vadd.f32 %v1209, %v1280
      %v1282 = vpop.f32.mrf.mxu0
      %v1283 = vpop.f32.mrf.mxu0
      %v1284 = vadd.f32 %v1212, %v1283
      %v1285 = vpop.f32.mrf.mxu0
      %1286 = vmatprep.mubr.bf16.mxu0 %v844
      %1287 = vmatmul.mubr.bf16.gmra.mxu0 %v471
      %v1288 = vpop.f32.mrf.mxu0
      %v1289 = vadd.f32 %v1217, %v1288
      %v1290 = vpop.f32.mrf.mxu0
      %v1291 = vpop.f32.mrf.mxu0
      %v1292 = vpop.f32.mrf.mxu0
      %1293 = vdwg.mxu0
      %1294 = vmatprep.subr.bf16.mxu0 0
      %1295 = vmatpush1.bf16.msra.mxu0 %v1093
      %1296 = vmatprep.subr.bf16.mxu0 0
      %1297 = vmatpush1.bf16.msra.mxu0 %v1092
      %1298 = vmatprep.subr.bf16.mxu0 0
      %1299 = vmatpush1.bf16.msra.mxu0 %v1091
      %1300 = vmatprep.subr.bf16.mxu0 0
      %1301 = vmatpush1.bf16.msra.mxu0 %v1090
      %1302 = vmatprep.subr.bf16.mxu0 0
      %1303 = vmatpush1.bf16.msra.mxu0 %v1089
      %1304 = vmatprep.subr.bf16.mxu0 0
      %1305 = vmatpush1.bf16.msra.mxu0 %v1088
      %1306 = vmatprep.subr.bf16.mxu0 0
      %1307 = vmatpush1.bf16.msra.mxu0 %v1087
      %1308 = vmatprep.subr.bf16.mxu0 0
      %1309 = vmatpush1.bf16.msra.mxu0 %v1086
      %1310 = vmatprep.subr.bf16.mxu0 0
      %1311 = vmatpush2.bf16.msra.mxu0 %v1101
      %1312 = vmatprep.subr.bf16.mxu0 0
      %1313 = vmatpush2.bf16.msra.mxu0 %v1100
      %1314 = vmatprep.subr.bf16.mxu0 0
      %1315 = vmatpush2.bf16.msra.mxu0 %v1099
      %1316 = vmatprep.subr.bf16.mxu0 0
      %1317 = vmatpush2.bf16.msra.mxu0 %v1098
      %1318 = vmatprep.subr.bf16.mxu0 0
      %1319 = vmatpush2.bf16.msra.mxu0 %v1097
      %1320 = vmatprep.subr.bf16.mxu0 0
      %1321 = vmatpush2.bf16.msra.mxu0 %v1096
      %1322 = vmatprep.subr.bf16.mxu0 0
      %1323 = vmatpush2.bf16.msra.mxu0 %v1095
      %1324 = vmatprep.subr.bf16.mxu0 0
      %1325 = vmatpush2.bf16.msra.mxu0 %v1094
      %1326 = vmatprep.mubr.bf16.mxu0 %v834
      %1327 = vmatmul.mubr.bf16.gmra.mxu0 %v833
      %v1328 = vpop.f32.mrf.mxu0
      %v1329 = vadd.f32 %v1257, %v1328
      %v1330 = vpop.f32.mrf.mxu0
      %v1331 = vpop.f32.mrf.mxu0
      %v1332 = vadd.f32 %v1260, %v1331
      %v1333 = vpop.f32.mrf.mxu0
      %1334 = vmatprep.mubr.bf16.mxu0 %v837
      %1335 = vmatmul.mubr.bf16.gmra.mxu0 %v836
      %v1336 = vpop.f32.mrf.mxu0
      %v1337 = vadd.f32 %v1265, %v1336
      %v1338 = vpop.f32.mrf.mxu0
      %v1339 = vpop.f32.mrf.mxu0
      %v1340 = vadd.f32 %v1268, %v1339
      %v1341 = vpop.f32.mrf.mxu0
      %1342 = vmatprep.mubr.bf16.mxu0 %v840
      %1343 = vmatmul.mubr.bf16.gmra.mxu0 %v839
      %v1344 = vpop.f32.mrf.mxu0
      %v1345 = vadd.f32 %v1273, %v1344
      %v1346 = vpop.f32.mrf.mxu0
      %v1347 = vpop.f32.mrf.mxu0
      %v1348 = vadd.f32 %v1276, %v1347
      %v1349 = vpop.f32.mrf.mxu0
      %1350 = vmatprep.mubr.bf16.mxu0 %v843
      %1351 = vmatmul.mubr.bf16.gmra.mxu0 %v842
      %v1352 = vpop.f32.mrf.mxu0
      %v1353 = vadd.f32 %v1281, %v1352
      %v1354 = vpop.f32.mrf.mxu0
      %v1355 = vpop.f32.mrf.mxu0
      %v1356 = vadd.f32 %v1284, %v1355
      %v1357 = vpop.f32.mrf.mxu0
      %1358 = vmatprep.mubr.bf16.mxu0 %v846
      %1359 = vmatmul.mubr.bf16.gmra.mxu0 %v845
      %v1360 = vpop.f32.mrf.mxu0
      %v1361 = vadd.f32 %v1289, %v1360
      %v1362 = vpop.f32.mrf.mxu0
      %v1363 = vpop.f32.mrf.mxu0
      %v1364 = vpop.f32.mrf.mxu0
      %1365 = vdwg.mxu0
      %v1366 = vld [vmem:[%s3] sm:$0x1]
      %v1368 = vlaneseq
      %v1369 = vshrl.u32 %v1368, 7
      %v1370 = vsub.s32 0, %v1369
      %v1371 = vrot.slane %v1366, %v1370
      %v1373 = vadd.f32 %v1329, %v1371
      %v1374 = vadd.f32 %v1332, %v1371
      %v1375 = vadd.f32 %v1337, %v1371
      %v1376 = vadd.f32 %v1340, %v1371
      %v1377 = vadd.f32 %v1345, %v1371
      %v1378 = vadd.f32 %v1348, %v1371
      %v1379 = vadd.f32 %v1353, %v1371
      %v1380 = vadd.f32 %v1356, %v1371
      %v1381 = vadd.f32 %v1361, %v1371
      %1382 = vst [vmem:[%s238] sm:$0xff] %v1373
      %1383 = vst [vmem:[%s238 + $0x8] sm:$0xff] %v1374
      %1384 = vst [vmem:[%s238 + $0x10] sm:$0xff] %v1375
      %1385 = vst [vmem:[%s238 + $0x18] sm:$0xff] %v1376
      %1386 = vst [vmem:[%s238 + $0x20] sm:$0xff] %v1377
      %1387 = vst [vmem:[%s238 + $0x28] sm:$0xff] %v1378
      %1388 = vst [vmem:[%s238 + $0x30] sm:$0xff] %v1379
      %1389 = vst [vmem:[%s238 + $0x38] sm:$0xff] %v1380
      %1390 = vst [vmem:[%s238 + $0x40] sm:$0xff] %v1381
      %s1391 = smul.u32 9, %s20
      %p1392 = scmp.lt.s32.totalorder %s19, 1
      %s1393 = scalar_select %p1392, %s19, 1
      %p1394 = scmp.lt.s32.totalorder %s1391, 8
      %s1395 = scalar_select %p1394, %s1391, 8
      %s1396 = smul.addr %s1393, 9
      %s1397 = sadd.s32 %s1395, %s1396
      %s1398 = smul.addr %s1397, 8
      %s1399 = scalar_lea.vmem %s4, %s1398
      // Predicated region
      $region37: #{downsample_forward.1} parent=35 // pred_check
        %p1400 = pneg %p138
      $region38: #{downsample_forward.1} parent=35 // pred_check_branch
        %1402 = sbr.rel (%p1400) target = $region40
      $region39: #{downsample_forward.1} parent=35 // pred_region
        %s1403 = smul.u32 9, %s20
      $region40: #{downsample_forward.1} parent=35 // pred_fallthru
        _
    $region36: #{downsample_forward.1} parent=5 // pred_fallthru
      _
    %p1404 = scmp.le.s32.totalorder 2, %s10
    // Predicated region
    $region41: #{downsample_forward.1} parent=5 // pred_check
      %p1405 = pneg %p1404
    $region42: #{downsample_forward.1} parent=5 // pred_check_branch
      %1407 = sbr.rel (%p1405) target = $region44
    $region43: #{downsample_forward.1} parent=5 // pred_region
      %s1408 = ssub.s32 %s10, 2
      // Predicated region
      $region45: #{downsample_forward.1} parent=43 // pred_check
        %p1409 = pneg %p144
      $region46: #{downsample_forward.1} parent=43 // pred_check_branch
        %1411 = sbr.rel (%p1409) target = $region48
      $region47: #{downsample_forward.1} parent=43 // pred_region
        %s1412 = smul.u32 9, %s22
        %p1413 = scmp.lt.s32.totalorder %s21, 1
        %s1414 = scalar_select %p1413, %s21, 1
        %p1415 = scmp.lt.s32.totalorder %s1412, 8
        %s1416 = scalar_select %p1415, %s1412, 8
        %s1417 = smul.addr %s1414, 9
        %s1418 = sadd.s32 %s1416, %s1417
        %s1419 = smul.addr %s1418, 8
        %s1420 = scalar_lea.vmem %s4, %s1419
      $region48: #{downsample_forward.1} parent=43 // pred_fallthru
        _
    $region44: #{downsample_forward.1} parent=5 // pred_fallthru
      _
  $region6: #{downsample_forward.1} parent=0 // loop_footer
    %s14 = sadd.s32 1, %s10
  $region7: #{downsample_forward.1} parent=0 // loop_footer_branch
    %9 = sbr.rel target = $region3
  $region8: #{downsample_forward.1} parent=0 // loop_exit
    _

</llo_original>
